<compile_context>
chip_gen: v6e
topology: v6e:2x2x1
jax: 0.10.0
libtpu: 0.0.40
codegen_flags: <defaults>
</compile_context>

<pallas_src>
import jax
import jax.numpy as jnp
from jax.experimental import pallas as pl
from jax.experimental.pallas import tpu as pltpu


def _softmax_dim0_kernel(x_ref, o_ref):
    # One (N, tile_d) lane-dense tile resident in VMEM.
    x = x_ref[...].astype(jnp.float32)
    m = jnp.max(x, axis=0, keepdims=True)      # XLU reduce over dim 0
    e = jnp.exp(x - m)                         # EUP transcendental
    s = jnp.sum(e, axis=0, keepdims=True)      # XLU reduce over dim 0
    # EUP approximate reciprocal + one Newton-Raphson step -> ~f32 accuracy
    # without a VALU divide on the (N, tile_d) elementwise path.
    inv = pl.reciprocal(s, approx=True)
    inv = inv * (2.0 - s * inv)
    o_ref[...] = (e * inv).astype(o_ref.dtype)


def my_softmax(x, *, tile_d=1024):
    """Softmax over dim 0, matching torch.nn.Softmax(dim=0) applied to x."""
    orig_shape = x.shape
    n = orig_shape[0]
    # Softmax over dim 0 of an arbitrary-rank tensor == column-wise softmax on
    # the (N, prod(trailing)) view; flattening keeps the kernel lane-dense.
    d = 1
    for s in orig_shape[1:]:
        d *= s
    x2 = x.reshape(n, d)

    # Lane-dense tile width: multiple of 128, capped by tile_d and by a VMEM
    # budget that covers double-buffered in/out tiles (HBM dtype) plus the
    # in-kernel f32 intermediates, so it fits comfortably on v5e/v6e/v7x.
    itemsize = jnp.dtype(x.dtype).itemsize
    vmem_limit = 32 * 1024 * 1024  # scoped-VMEM limit we request below
    budget = 24 * 1024 * 1024      # working-set budget with headroom

    td = min(tile_d, pl.cdiv(d, 128) * 128)

    def working_set(tw):
        # 2x double-buffered input + 2x double-buffered output tiles in the
        # HBM dtype, plus ~2 f32 intermediates (x upcast, exp) inside the body.
        return (4 * itemsize + 2 * 4) * n * tw

    while td > 128 and working_set(td) > budget:
        td -= 128
    # TODO(synk): for very large N (an N x 128 tile no longer fits VMEM), add a
    # second trailing "arbitrary" grid axis over N with online max/sum
    # accumulators in VMEM scratch instead of shrinking the lane width.

    d_pad = pl.cdiv(d, td) * td
    if d_pad != d:
        # Padded columns compute an independent (discarded) softmax; they do
        # not contaminate the dim-0 reduction of real columns.
        x2 = jnp.pad(x2, ((0, 0), (0, d_pad - d)))

    out = pl.pallas_call(
        _softmax_dim0_kernel,
        out_shape=jax.ShapeDtypeStruct((n, d_pad), x.dtype),
        grid_spec=pltpu.PrefetchScalarGridSpec(
            num_scalar_prefetch=0,
            grid=(d_pad // td,),
            in_specs=[pl.BlockSpec((n, td), lambda j: (0, j))],
            out_specs=pl.BlockSpec((n, td), lambda j: (0, j)),
        ),
        compiler_params=pltpu.CompilerParams(
            # Column tiles are independent -> parallel (megacore-shardable on
            # v7x, harmless on v5e/v6e).
            dimension_semantics=("parallel",),
            vmem_limit_bytes=vmem_limit,
        ),
    )(x2)

    if d_pad != d:
        out = out[:, :d]
    return out.reshape(orig_shape)


if __name__ == "__main__":
    key = jax.random.PRNGKey(0)

    # Small shape consistent with the module: [seq=8, hidden=32], softmax
    # over dim 0.
    x = jax.random.normal(key, (8, 32), dtype=jnp.float32)
    out = jax.block_until_ready(my_softmax(x))
    ref = jax.nn.softmax(x, axis=0)
    assert out.shape == x.shape and out.dtype == x.dtype
    assert jnp.allclose(out, ref, atol=1e-5, rtol=1e-5)
    assert jnp.allclose(jnp.sum(out, axis=0), jnp.ones((32,)), atol=1e-5)

    # A second, larger shape that exercises the tiled (grid > 1) path.
    x2 = jax.random.normal(jax.random.PRNGKey(1), (64, 4096), dtype=jnp.float32)
    out2 = jax.block_until_ready(my_softmax(x2))
    ref2 = jax.nn.softmax(x2, axis=0)
    assert jnp.allclose(out2, ref2, atol=1e-5, rtol=1e-5)
    assert jnp.allclose(jnp.sum(out2, axis=0), jnp.ones((4096,)), atol=1e-5)

    # A 3-D case (softmax over dim 0 of a rank-3 tensor, non-multiple-of-128
    # trailing size -> exercises the padding path).
    x3 = jax.random.normal(jax.random.PRNGKey(2), (8, 4, 50), dtype=jnp.float32)
    out3 = jax.block_until_ready(my_softmax(x3))
    ref3 = jax.nn.softmax(x3, axis=0)
    assert jnp.allclose(out3, ref3, atol=1e-5, rtol=1e-5)

    print("KERNEL_OK")
</pallas_src>

<mosaic_0001>
module attributes {stable_mosaic.version = 11 : i64} {
  func.func @_softmax_dim0_kernel(%arg0: i32, %arg1: memref<8x128xf32, #tpu.memory_space<vmem>>, %arg2: memref<8x128xf32, #tpu.memory_space<vmem>>) attributes {dimension_semantics = [#tpu.dimension_semantics<parallel>], iteration_bounds = array<i64: 1>, scalar_prefetch = 0 : i64, scratch_operands = 0 : i64, tpu.core_type = #tpu.core_type<tc>, window_params = [{transform_indices = @transform_0, window_bounds = array<i64: 8, 128>}, {transform_indices = @transform_1, window_bounds = array<i64: 8, 128>}]} {
    %c0 = arith.constant 0 : index
    %c0_0 = arith.constant 0 : index
    %0 = vector.load %arg1[%c0, %c0_0] : memref<8x128xf32, #tpu.memory_space<vmem>>, vector<8x128xf32>
    %cst = arith.constant dense<0xFF800000> : vector<128xf32>
    %1 = vector.multi_reduction <maximumf>, %0, %cst [0] : vector<8x128xf32> to vector<128xf32>
    %2 = vector.shape_cast %1 : vector<128xf32> to vector<1x128xf32>
    %3 = vector.broadcast %2 : vector<1x128xf32> to vector<8x128xf32>
    %4 = arith.subf %0, %3 : vector<8x128xf32>
    %5 = math.exp %4 : vector<8x128xf32>
    %cst_1 = arith.constant dense<0.000000e+00> : vector<128xf32>
    %6 = vector.multi_reduction <add>, %5, %cst_1 [0] : vector<8x128xf32> to vector<128xf32>
    %7 = vector.shape_cast %6 : vector<128xf32> to vector<1x128xf32>
    %8 = tpu.reciprocal %7 {approx = true} : vector<1x128xf32> -> vector<1x128xf32>
    %9 = arith.mulf %7, %8 : vector<1x128xf32>
    %cst_2 = arith.constant 2.000000e+00 : f32
    %10 = vector.broadcast %cst_2 : f32 to vector<1x128xf32>
    %11 = arith.subf %10, %9 : vector<1x128xf32>
    %12 = arith.mulf %8, %11 : vector<1x128xf32>
    %13 = vector.broadcast %12 : vector<1x128xf32> to vector<8x128xf32>
    %14 = arith.mulf %5, %13 : vector<8x128xf32>
    %c0_3 = arith.constant 0 : index
    %c0_4 = arith.constant 0 : index
    %15 = vector.load %arg2[%c0_3, %c0_4] : memref<8x128xf32, #tpu.memory_space<vmem>>, vector<8x128xf32>
    tpu.vector_store %arg2[%c0_3, %c0_4], %14 {strides = array<i32>} : memref<8x128xf32, #tpu.memory_space<vmem>>, vector<8x128xf32>,
    return
  }
  func.func @transform_0(%arg0: i32) -> (i32, i32) {
    %c0_i32 = arith.constant 0 : i32
    %c0_i32_0 = arith.constant 0 : i32
    return %c0_i32, %arg0 : i32, i32
  }
  func.func @transform_1(%arg0: i32) -> (i32, i32) {
    %c0_i32 = arith.constant 0 : i32
    %c0_i32_0 = arith.constant 0 : i32
    return %c0_i32, %arg0 : i32, i32
  }
}

</mosaic_0001>

<llo_original>
// kernel: tpu_custom_call.1
$region0: #{tpu_custom_call.1}
  #allocation0 [shape = 'u32[]', space=smem, size = 0x4, offset = 0x4, fixed_abs, tag = 'smem constant byte address 0x4 - core index']
  #allocation1 [shape = 'u32[144,128]{1,0:T(1,128)}', space=vmem, size = 0x12000, scoped, tag = 'internal scratch']
  %s0 = inlined_call_operand.hbm [shape: f32[8,128], index: 0, kind: input, shape index: {}]
  %s1 = inlined_call_operand.hbm [shape: f32[8,128], index: 1, kind: output, shape index: {}]
  %s2 = sld [smem:[#allocation0]]
  $region18: #{tpu_custom_call.1} parent=0
    _
  %s4 = ssub.s32 1, %s2
  %s5 = scalar_select 0, %s4, %s2
  $region1: #{tpu_custom_call.1} parent=0
    #allocation2 [shape = 'u8[4096]{0}', space=vmem, size = 0x1000, scoped, tag = 'input window, operand 0, single buffered']
    #allocation3 [shape = 's32[1]{0}', space=sflag, size = 0x4, scoped, tag = 'scoped memory for tpu_custom_call.1']
    #allocation4 [shape = 's32[1]{0}', space=sflag, size = 0x4, scoped, tag = 'scoped memory for tpu_custom_call.1']
    #allocation5 [shape = 'u8[4096]{0}', space=vmem, size = 0x1000, scoped, tag = 'output window, operand 0, single buffered']
    %6 = vsyncpa [#allocation3], 0
    %7 = vsyncpa [#allocation4], 0
    // Predicated region
    $region2: #{tpu_custom_call.1} parent=1 // pred_check
      _
    $region3: #{tpu_custom_call.1} parent=1 // pred_check_branch
      %9 = sbr.rel (0) target = $region5
    $region4: #{tpu_custom_call.1} parent=1 // pred_region
      %s11 = ssub.s32 128, 128
      %12 = vsyncadd [#allocation3], %s11
      %s14 = sshll.u32 [#allocation2], 4
      %s15 = int_to_ptr.vmem [resolvable:$true] %s14
      %17 = dma.hbm_to_vmem [thread:$0]  %s0, 128, %s15, [#allocation3]
    $region5: #{tpu_custom_call.1} parent=1 // pred_fallthru
      _
    // Predicated region
    $region6: #{tpu_custom_call.1} parent=1 // pred_check
      _
    $region7: #{tpu_custom_call.1} parent=1 // pred_check_branch
      %19 = sbr.rel (0) target = $region9
    $region8: #{tpu_custom_call.1} parent=1 // pred_region
      %20 = dma.done [#allocation3], 128
    $region9: #{tpu_custom_call.1} parent=1 // pred_fallthru
      _
    %v21 = vld [vmem:[#allocation2] sm:$0xff]
    %v22 = vrot.slane %v21, 4
    %v23 = vmax.f32 %v21, %v22
    %v24 = vrot.slane %v23, 2
    %v25 = vmax.f32 %v23, %v24
    %v26 = vrot.slane %v25, 1
    %v27 = vmax.f32 %v25, %v26
    %v28 = vsub.f32 %v21, %v27
    %v29 = vmul.f32 %v28, 1.442695
    %v30 = vpow.pop %v29
    %v31 = vrot.slane %v30, 4
    %v32 = vadd.f32 %v30, %v31
    %v33 = vrot.slane %v32, 2
    %v34 = vadd.f32 %v32, %v33
    %v35 = vrot.slane %v34, 1
    %v36 = vadd.f32 %v34, %v35
    %v37 = vrcp.pop %v36
    %v38 = vmul.f32 %v36, %v37
    %v39 = vsub.f32 2.0, %v38
    %v40 = vmul.f32 %v37, %v39
    %v41 = vmul.f32 %v30, %v40
    %42 = vst [vmem:[#allocation5] sm:$0xff] %v41
    // Predicated region
    $region10: #{tpu_custom_call.1} parent=1 // pred_check
      _
    $region11: #{tpu_custom_call.1} parent=1 // pred_check_branch
      %44 = sbr.rel (0) target = $region13
    $region12: #{tpu_custom_call.1} parent=1 // pred_region
      %s46 = ssub.s32 128, 128
      %47 = vsyncadd [#allocation4], %s46
      %s49 = sshll.u32 [#allocation5], 4
      %s50 = int_to_ptr.vmem [resolvable:$true] %s49
      %52 = dma.vmem_to_hbm [thread:$0]  %s50, 128, %s1, [#allocation4]
    $region13: #{tpu_custom_call.1} parent=1 // pred_fallthru
      _
    // Predicated region
    $region14: #{tpu_custom_call.1} parent=1 // pred_check
      _
    $region15: #{tpu_custom_call.1} parent=1 // pred_check_branch
      %54 = sbr.rel (0) target = $region17
    $region16: #{tpu_custom_call.1} parent=1 // pred_region
      %55 = dma.done [#allocation4], 128
    $region17: #{tpu_custom_call.1} parent=1 // pred_fallthru
      _
    %56 = vsyncpa [#allocation3], 1
    %57 = vsyncpa [#allocation4], 1

</llo_original>
